<compile_context>
chip_gen: v5e
topology: v5e:2x2
jax: 0.10.0
libtpu: 0.0.40
codegen_flags: <defaults>
</compile_context>

<pallas_src>
import functools
import math

import jax
import jax.numpy as jnp
from jax.experimental import pallas as pl
from jax.experimental.pallas import tpu as pltpu


# ---------------------------------------------------------------------------
# Kernel: one grid step == one channel GROUP (CG channels packed block-diagonally
# into the lane dimension).  All blocks equal the full array extents on their last
# two dims, so the (8,128) rule is satisfied regardless of B / feature sizes.
# ---------------------------------------------------------------------------
def _residual_net_kernel(num_blocks,
                         x_ref,    # (1, B, CG*Fin)            f32
                         wi_ref,   # (1, CG*Fin, CG*H)         bf16 (block-diag)
                         bi_ref,   # (1, 1, CG*H)              f32
                         w0_ref,   # (1, NB, CG*H, CG*H)       bf16 (block-diag)
                         b0_ref,   # (1, NB, 1, CG*H)          f32
                         w1_ref,   # (1, NB, CG*H, CG*H)       bf16 (block-diag)
                         b1_ref,   # (1, NB, 1, CG*H)          f32
                         wf_ref,   # (1, CG*H, CG*Fout)        bf16 (block-diag)
                         bf_ref,   # (1, 1, CG*Fout)           f32
                         o_ref):   # (1, B, CG*Fout)           f32
    cdt = wi_ref.dtype  # MXU operand dtype (bf16); accumulation stays f32

    x = x_ref[0].astype(cdt)                                           # (B, CG*Fin)

    # initial layer
    h = jnp.dot(x, wi_ref[0], preferred_element_type=jnp.float32) + bi_ref[0]

    # residual blocks (statically unrolled; num_blocks is a Python int)
    for i in range(num_blocks):
        t = jnp.maximum(h, 0.0).astype(cdt)                            # relu
        t = jnp.dot(t, w0_ref[0, i],
                    preferred_element_type=jnp.float32) + b0_ref[0, i]
        t = jnp.maximum(t, 0.0).astype(cdt)                            # relu
        # dropout(p=0.0) is the identity.
        t = jnp.dot(t, w1_ref[0, i],
                    preferred_element_type=jnp.float32) + b1_ref[0, i]
        h = h + t                                                      # residual (f32)

    # final layer
    y = jnp.dot(h.astype(cdt), wf_ref[0],
                preferred_element_type=jnp.float32) + bf_ref[0]
    o_ref[0] = y.astype(o_ref.dtype)


# ---------------------------------------------------------------------------
# Wrapper
# ---------------------------------------------------------------------------
def residual_net_pallas(x_bcf, packed_params, num_blocks):
    """x_bcf: (B, C, Fin) float32 in PyTorch layout.  Returns (B, C, Fout) float32."""
    wi, bi, w0, b0, w1, b1, wf, bf = packed_params
    G, fin_g, h_g = wi.shape
    fout_g = wf.shape[-1]
    B, C, Fin = x_bcf.shape
    CG = C // G
    assert fin_g == CG * Fin
    NB = num_blocks

    # (B, C, Fin) -> (G, B, CG*Fin).  For G == 1 this is a free reshape (no transpose).
    x_g = jnp.transpose(x_bcf.reshape(B, G, CG * Fin), (1, 0, 2))

    kernel = functools.partial(_residual_net_kernel, num_blocks)

    out_g = pl.pallas_call(
        kernel,
        out_shape=jax.ShapeDtypeStruct((G, B, fout_g), jnp.float32),
        grid_spec=pltpu.PrefetchScalarGridSpec(
            num_scalar_prefetch=0,
            grid=(G,),
            in_specs=[
                pl.BlockSpec((1, B, fin_g),     lambda g: (g, 0, 0)),      # x
                pl.BlockSpec((1, fin_g, h_g),   lambda g: (g, 0, 0)),      # wi
                pl.BlockSpec((1, 1, h_g),       lambda g: (g, 0, 0)),      # bi
                pl.BlockSpec((1, NB, h_g, h_g), lambda g: (g, 0, 0, 0)),   # w0 (all blocks)
                pl.BlockSpec((1, NB, 1, h_g),   lambda g: (g, 0, 0, 0)),   # b0
                pl.BlockSpec((1, NB, h_g, h_g), lambda g: (g, 0, 0, 0)),   # w1
                pl.BlockSpec((1, NB, 1, h_g),   lambda g: (g, 0, 0, 0)),   # b1
                pl.BlockSpec((1, h_g, fout_g),  lambda g: (g, 0, 0)),      # wf
                pl.BlockSpec((1, 1, fout_g),    lambda g: (g, 0, 0)),      # bf
            ],
            out_specs=pl.BlockSpec((1, B, fout_g), lambda g: (g, 0, 0)),
        ),
        compiler_params=pltpu.CompilerParams(
            dimension_semantics=("parallel",)),   # groups split across v7x's 2 TCs
    )(x_g, wi, bi, w0, b0, w1, b1, wf, bf)

    # (G, B, CG*Fout) -> (B, C, Fout).  Free reshape for G == 1.
    Fout = fout_g // CG
    return jnp.transpose(out_g, (1, 0, 2)).reshape(B, C, Fout)


# ---------------------------------------------------------------------------
# Parameter construction (mimics LinearWithChannel shapes) + block-diagonal packing
# ---------------------------------------------------------------------------
def make_raw_params(key, channels, in_features, hidden_features, out_features, num_blocks):
    ks = list(jax.random.split(key, 4 + 4 * num_blocks))
    ki = iter(ks)

    def linear_params(k, c, fin, fout, zero_init=False):
        k1, k2 = jax.random.split(k)
        if zero_init:
            bound_w = bound_b = 1e-3
        else:
            bound_w = math.sqrt(6.0 / fin) * 0.5   # kaiming-uniform-ish, deterministic
            bound_b = 1.0 / math.sqrt(fin)
        w = jax.random.uniform(k1, (c, fout, fin), jnp.float32, -bound_w, bound_w)
        b = jax.random.uniform(k2, (c, fout), jnp.float32, -bound_b, bound_b)
        return w, b

    C, Fin, H, Fout = channels, in_features, hidden_features, out_features

    wi_raw, bi_raw = linear_params(next(ki), C, Fin, H)
    wb0_raw, bb0_raw, wb1_raw, bb1_raw = [], [], [], []
    for _ in range(num_blocks):
        w0, b0 = linear_params(next(ki), C, H, H)
        w1, b1 = linear_params(next(ki), C, H, H, zero_init=True)  # zero_initialization=True
        wb0_raw.append(w0); bb0_raw.append(b0)
        wb1_raw.append(w1); bb1_raw.append(b1)
    wf_raw, bf_raw = linear_params(next(ki), C, H, Fout)

    return (wi_raw, bi_raw, wb0_raw, bb0_raw, wb1_raw, bb1_raw, wf_raw, bf_raw)


def _pick_channels_per_group(channels, hidden_features, target_lanes=256):
    """Largest divisor of `channels` whose packed hidden width is ~<= target_lanes."""
    cg = max(1, min(channels, target_lanes // max(hidden_features, 1)))
    while channels % cg != 0:
        cg -= 1
    return cg


def _block_diag(w_raw, group_size):
    """w_raw: (C, Fout, Fin) -> (G, CG*Fin, CG*Fout); per-group block-diagonal of W[c]^T."""
    C, fo, fi = w_raw.shape
    G = C // group_size
    wt = jnp.transpose(w_raw, (0, 2, 1)).reshape(G, group_size, fi, fo)   # (G,CG,Fin,Fout)
    eye = jnp.eye(group_size, dtype=w_raw.dtype)                          # (CG,CG)
    bd = wt[:, :, :, None, :] * eye[None, :, None, :, None]               # (G,CG,Fin,CG,Fout)
    return bd.reshape(G, group_size * fi, group_size * fo)


def _pack_bias(b_raw, group_size):
    """b_raw: (C, Fout) -> (G, 1, CG*Fout)."""
    C, fo = b_raw.shape
    G = C // group_size
    return b_raw.reshape(G, 1, group_size * fo)


def pack_params(raw_params, channels_per_group, matmul_dtype=jnp.bfloat16):
    """Build lane-dense block-diagonal weights (bf16) and packed biases (f32)."""
    wi_raw, bi_raw, wb0_raw, bb0_raw, wb1_raw, bb1_raw, wf_raw, bf_raw = raw_params
    cg = channels_per_group
    wi = _block_diag(wi_raw, cg).astype(matmul_dtype)                             # (G, CG*Fin, CG*H)
    bi = _pack_bias(bi_raw, cg)                                                   # (G, 1, CG*H)
    w0 = jnp.stack([_block_diag(w, cg) for w in wb0_raw], axis=1).astype(matmul_dtype)  # (G,NB,Hg,Hg)
    b0 = jnp.stack([_pack_bias(b, cg) for b in bb0_raw], axis=1)                        # (G,NB,1,Hg)
    w1 = jnp.stack([_block_diag(w, cg) for w in wb1_raw], axis=1).astype(matmul_dtype)
    b1 = jnp.stack([_pack_bias(b, cg) for b in bb1_raw], axis=1)
    wf = _block_diag(wf_raw, cg).astype(matmul_dtype)                             # (G, CG*H, CG*Fout)
    bf = _pack_bias(bf_raw, cg)                                                   # (G, 1, CG*Fout)
    return (wi, bi, w0, b0, w1, b1, wf, bf)


# ---------------------------------------------------------------------------
# Pure-JAX reference (mirrors the PyTorch forward exactly, full f32)
# ---------------------------------------------------------------------------
def residual_net_ref(x, raw_params, num_blocks):
    wi, bi, wb0, bb0, wb1, bb1, wf, bf = raw_params

    def lin(w, b, t):  # w: (C, Fout, Fin), b: (C, Fout), t: (B, C, Fin)
        return jnp.einsum('coi,bci->bco', w, t) + b[None]

    h = lin(wi, bi, x)
    for i in range(num_blocks):
        t = jax.nn.relu(h)
        t = lin(wb0[i], bb0[i], t)
        t = jax.nn.relu(t)
        t = lin(wb1[i], bb1[i], t)
        h = h + t
    return lin(wf, bf, h)


if __name__ == "__main__":
    B, C = 2, 4
    IN_FEATURES, HIDDEN, OUT_FEATURES = 16, 32, 8
    NUM_BLOCKS = 2

    key = jax.random.PRNGKey(0)
    kx, kp = jax.random.split(key)
    x = jax.random.normal(kx, (B, C, IN_FEATURES), dtype=jnp.float32)

    raw_params = make_raw_params(kp, C, IN_FEATURES, HIDDEN, OUT_FEATURES, NUM_BLOCKS)
    cg = _pick_channels_per_group(C, HIDDEN)      # -> 4: one group, 128-lane hidden width
    packed_params = pack_params(raw_params, cg)

    y = residual_net_pallas(x, packed_params, NUM_BLOCKS)
    y = jax.block_until_ready(y)

    y_ref = residual_net_ref(x, raw_params, NUM_BLOCKS)
    assert y.shape == (B, C, OUT_FEATURES), y.shape
    # bf16 matmul operands vs full-f32 reference -> moderate tolerance.
    assert jnp.allclose(y, y_ref, rtol=3e-2, atol=3e-2), (
        float(jnp.max(jnp.abs(y - y_ref))))

    print("KERNEL_OK")
</pallas_src>

<mosaic_0001>
module attributes {stable_mosaic.version = 11 : i64} {
  func.func @_residual_net_kernel(%arg0: i32, %arg1: memref<1x2x64xf32, #tpu.memory_space<vmem>>, %arg2: memref<1x64x128xbf16, #tpu.memory_space<vmem>>, %arg3: memref<1x1x128xf32, #tpu.memory_space<vmem>>, %arg4: memref<1x2x128x128xbf16, #tpu.memory_space<vmem>>, %arg5: memref<1x2x1x128xf32, #tpu.memory_space<vmem>>, %arg6: memref<1x2x128x128xbf16, #tpu.memory_space<vmem>>, %arg7: memref<1x2x1x128xf32, #tpu.memory_space<vmem>>, %arg8: memref<1x128x32xbf16, #tpu.memory_space<vmem>>, %arg9: memref<1x1x32xf32, #tpu.memory_space<vmem>>, %arg10: memref<1x2x32xf32, #tpu.memory_space<vmem>>) attributes {dimension_semantics = [#tpu.dimension_semantics<parallel>], iteration_bounds = array<i64: 1>, scalar_prefetch = 0 : i64, scratch_operands = 0 : i64, tpu.core_type = #tpu.core_type<tc>, window_params = [{transform_indices = @transform_0, window_bounds = array<i64: 1, 2, 64>}, {transform_indices = @transform_1, window_bounds = array<i64: 1, 64, 128>}, {transform_indices = @transform_2, window_bounds = array<i64: 1, 1, 128>}, {transform_indices = @transform_3, window_bounds = array<i64: 1, 2, 128, 128>}, {transform_indices = @transform_4, window_bounds = array<i64: 1, 2, 1, 128>}, {transform_indices = @transform_5, window_bounds = array<i64: 1, 2, 128, 128>}, {transform_indices = @transform_6, window_bounds = array<i64: 1, 2, 1, 128>}, {transform_indices = @transform_7, window_bounds = array<i64: 1, 128, 32>}, {transform_indices = @transform_8, window_bounds = array<i64: 1, 1, 32>}, {transform_indices = @transform_9, window_bounds = array<i64: 1, 2, 32>}]} {
    %c0 = arith.constant 0 : index
    %c0_0 = arith.constant 0 : index
    %c0_1 = arith.constant 0 : index
    %0 = vector.load %arg1[%c0, %c0_0, %c0_1] : memref<1x2x64xf32, #tpu.memory_space<vmem>>, vector<1x2x64xf32>
    %1 = vector.shape_cast %0 : vector<1x2x64xf32> to vector<2x64xf32>
    %2 = arith.truncf %1 : vector<2x64xf32> to vector<2x64xbf16>
    %c0_2 = arith.constant 0 : index
    %c0_3 = arith.constant 0 : index
    %c0_4 = arith.constant 0 : index
    %3 = vector.load %arg2[%c0_2, %c0_3, %c0_4] : memref<1x64x128xbf16, #tpu.memory_space<vmem>>, vector<1x64x128xbf16>
    %4 = vector.shape_cast %3 : vector<1x64x128xbf16> to vector<64x128xbf16>
    %cst = arith.constant dense<0.000000e+00> : vector<2x128xf32>
    %5 = tpu.matmul %2, %4, %cst {dimension_numbers = #tpu.dot_dimension_numbers<[1], [0], [0], [1], [0, 0, 1, 1], [], []>} : vector<2x64xbf16>, vector<64x128xbf16>, vector<2x128xf32> -> vector<2x128xf32>
    %c0_5 = arith.constant 0 : index
    %c0_6 = arith.constant 0 : index
    %c0_7 = arith.constant 0 : index
    %6 = vector.load %arg3[%c0_5, %c0_6, %c0_7] : memref<1x1x128xf32, #tpu.memory_space<vmem>>, vector<1x1x128xf32>
    %7 = vector.shape_cast %6 : vector<1x1x128xf32> to vector<1x128xf32>
    %8 = vector.broadcast %7 : vector<1x128xf32> to vector<2x128xf32>
    %9 = arith.addf %5, %8 : vector<2x128xf32>
    %cst_8 = arith.constant 0.000000e+00 : f32
    %10 = vector.broadcast %cst_8 : f32 to vector<2x128xf32>
    %11 = arith.maximumf %9, %10 : vector<2x128xf32>
    %12 = arith.truncf %11 : vector<2x128xf32> to vector<2x128xbf16>
    %c0_9 = arith.constant 0 : index
    %c0_10 = arith.constant 0 : index
    %c0_11 = arith.constant 0 : index
    %c0_12 = arith.constant 0 : index
    %13 = vector.load %arg4[%c0_9, %c0_10, %c0_11, %c0_12] : memref<1x2x128x128xbf16, #tpu.memory_space<vmem>>, vector<1x1x128x128xbf16>
    %14 = vector.shape_cast %13 : vector<1x1x128x128xbf16> to vector<128x128xbf16>
    %cst_13 = arith.constant dense<0.000000e+00> : vector<2x128xf32>
    %15 = tpu.matmul %12, %14, %cst_13 {dimension_numbers = #tpu.dot_dimension_numbers<[1], [0], [0], [1], [0, 0, 1, 1], [], []>} : vector<2x128xbf16>, vector<128x128xbf16>, vector<2x128xf32> -> vector<2x128xf32>
    %c0_14 = arith.constant 0 : index
    %c0_15 = arith.constant 0 : index
    %c0_16 = arith.constant 0 : index
    %c0_17 = arith.constant 0 : index
    %16 = vector.load %arg5[%c0_14, %c0_15, %c0_16, %c0_17] : memref<1x2x1x128xf32, #tpu.memory_space<vmem>>, vector<1x1x1x128xf32>
    %17 = vector.shape_cast %16 : vector<1x1x1x128xf32> to vector<1x128xf32>
    %18 = vector.broadcast %17 : vector<1x128xf32> to vector<2x128xf32>
    %19 = arith.addf %15, %18 : vector<2x128xf32>
    %cst_18 = arith.constant 0.000000e+00 : f32
    %20 = vector.broadcast %cst_18 : f32 to vector<2x128xf32>
    %21 = arith.maximumf %19, %20 : vector<2x128xf32>
    %22 = arith.truncf %21 : vector<2x128xf32> to vector<2x128xbf16>
    %c0_19 = arith.constant 0 : index
    %c0_20 = arith.constant 0 : index
    %c0_21 = arith.constant 0 : index
    %c0_22 = arith.constant 0 : index
    %23 = vector.load %arg6[%c0_19, %c0_20, %c0_21, %c0_22] : memref<1x2x128x128xbf16, #tpu.memory_space<vmem>>, vector<1x1x128x128xbf16>
    %24 = vector.shape_cast %23 : vector<1x1x128x128xbf16> to vector<128x128xbf16>
    %cst_23 = arith.constant dense<0.000000e+00> : vector<2x128xf32>
    %25 = tpu.matmul %22, %24, %cst_23 {dimension_numbers = #tpu.dot_dimension_numbers<[1], [0], [0], [1], [0, 0, 1, 1], [], []>} : vector<2x128xbf16>, vector<128x128xbf16>, vector<2x128xf32> -> vector<2x128xf32>
    %c0_24 = arith.constant 0 : index
    %c0_25 = arith.constant 0 : index
    %c0_26 = arith.constant 0 : index
    %c0_27 = arith.constant 0 : index
    %26 = vector.load %arg7[%c0_24, %c0_25, %c0_26, %c0_27] : memref<1x2x1x128xf32, #tpu.memory_space<vmem>>, vector<1x1x1x128xf32>
    %27 = vector.shape_cast %26 : vector<1x1x1x128xf32> to vector<1x128xf32>
    %28 = vector.broadcast %27 : vector<1x128xf32> to vector<2x128xf32>
    %29 = arith.addf %25, %28 : vector<2x128xf32>
    %30 = arith.addf %9, %29 : vector<2x128xf32>
    %cst_28 = arith.constant 0.000000e+00 : f32
    %31 = vector.broadcast %cst_28 : f32 to vector<2x128xf32>
    %32 = arith.maximumf %30, %31 : vector<2x128xf32>
    %33 = arith.truncf %32 : vector<2x128xf32> to vector<2x128xbf16>
    %c0_29 = arith.constant 0 : index
    %c1 = arith.constant 1 : index
    %c0_30 = arith.constant 0 : index
    %c0_31 = arith.constant 0 : index
    %34 = vector.load %arg4[%c0_29, %c1, %c0_30, %c0_31] : memref<1x2x128x128xbf16, #tpu.memory_space<vmem>>, vector<1x1x128x128xbf16>
    %35 = vector.shape_cast %34 : vector<1x1x128x128xbf16> to vector<128x128xbf16>
    %cst_32 = arith.constant dense<0.000000e+00> : vector<2x128xf32>
    %36 = tpu.matmul %33, %35, %cst_32 {dimension_numbers = #tpu.dot_dimension_numbers<[1], [0], [0], [1], [0, 0, 1, 1], [], []>} : vector<2x128xbf16>, vector<128x128xbf16>, vector<2x128xf32> -> vector<2x128xf32>
    %c0_33 = arith.constant 0 : index
    %c1_34 = arith.constant 1 : index
    %c0_35 = arith.constant 0 : index
    %c0_36 = arith.constant 0 : index
    %37 = vector.load %arg5[%c0_33, %c1_34, %c0_35, %c0_36] : memref<1x2x1x128xf32, #tpu.memory_space<vmem>>, vector<1x1x1x128xf32>
    %38 = vector.shape_cast %37 : vector<1x1x1x128xf32> to vector<1x128xf32>
    %39 = vector.broadcast %38 : vector<1x128xf32> to vector<2x128xf32>
    %40 = arith.addf %36, %39 : vector<2x128xf32>
    %cst_37 = arith.constant 0.000000e+00 : f32
    %41 = vector.broadcast %cst_37 : f32 to vector<2x128xf32>
    %42 = arith.maximumf %40, %41 : vector<2x128xf32>
    %43 = arith.truncf %42 : vector<2x128xf32> to vector<2x128xbf16>
    %c0_38 = arith.constant 0 : index
    %c1_39 = arith.constant 1 : index
    %c0_40 = arith.constant 0 : index
    %c0_41 = arith.constant 0 : index
    %44 = vector.load %arg6[%c0_38, %c1_39, %c0_40, %c0_41] : memref<1x2x128x128xbf16, #tpu.memory_space<vmem>>, vector<1x1x128x128xbf16>
    %45 = vector.shape_cast %44 : vector<1x1x128x128xbf16> to vector<128x128xbf16>
    %cst_42 = arith.constant dense<0.000000e+00> : vector<2x128xf32>
    %46 = tpu.matmul %43, %45, %cst_42 {dimension_numbers = #tpu.dot_dimension_numbers<[1], [0], [0], [1], [0, 0, 1, 1], [], []>} : vector<2x128xbf16>, vector<128x128xbf16>, vector<2x128xf32> -> vector<2x128xf32>
    %c0_43 = arith.constant 0 : index
    %c1_44 = arith.constant 1 : index
    %c0_45 = arith.constant 0 : index
    %c0_46 = arith.constant 0 : index
    %47 = vector.load %arg7[%c0_43, %c1_44, %c0_45, %c0_46] : memref<1x2x1x128xf32, #tpu.memory_space<vmem>>, vector<1x1x1x128xf32>
    %48 = vector.shape_cast %47 : vector<1x1x1x128xf32> to vector<1x128xf32>
    %49 = vector.broadcast %48 : vector<1x128xf32> to vector<2x128xf32>
    %50 = arith.addf %46, %49 : vector<2x128xf32>
    %51 = arith.addf %30, %50 : vector<2x128xf32>
    %52 = arith.truncf %51 : vector<2x128xf32> to vector<2x128xbf16>
    %c0_47 = arith.constant 0 : index
    %c0_48 = arith.constant 0 : index
    %c0_49 = arith.constant 0 : index
    %53 = vector.load %arg8[%c0_47, %c0_48, %c0_49] : memref<1x128x32xbf16, #tpu.memory_space<vmem>>, vector<1x128x32xbf16>
    %54 = vector.shape_cast %53 : vector<1x128x32xbf16> to vector<128x32xbf16>
    %cst_50 = arith.constant dense<0.000000e+00> : vector<2x32xf32>
    %55 = tpu.matmul %52, %54, %cst_50 {dimension_numbers = #tpu.dot_dimension_numbers<[1], [0], [0], [1], [0, 0, 1, 1], [], []>} : vector<2x128xbf16>, vector<128x32xbf16>, vector<2x32xf32> -> vector<2x32xf32>
    %c0_51 = arith.constant 0 : index
    %c0_52 = arith.constant 0 : index
    %c0_53 = arith.constant 0 : index
    %56 = vector.load %arg9[%c0_51, %c0_52, %c0_53] : memref<1x1x32xf32, #tpu.memory_space<vmem>>, vector<1x1x32xf32>
    %57 = vector.shape_cast %56 : vector<1x1x32xf32> to vector<1x32xf32>
    %58 = vector.broadcast %57 : vector<1x32xf32> to vector<2x32xf32>
    %59 = arith.addf %55, %58 : vector<2x32xf32>
    %c0_54 = arith.constant 0 : index
    %c0_55 = arith.constant 0 : index
    %c0_56 = arith.constant 0 : index
    %60 = vector.load %arg10[%c0_54, %c0_55, %c0_56] : memref<1x2x32xf32, #tpu.memory_space<vmem>>, vector<1x2x32xf32>
    %61 = vector.shape_cast %60 : vector<1x2x32xf32> to vector<2x32xf32>
    %62 = vector.shape_cast %59 : vector<2x32xf32> to vector<1x2x32xf32>
    tpu.vector_store %arg10[%c0_54, %c0_55, %c0_56], %62 {strides = array<i32>} : memref<1x2x32xf32, #tpu.memory_space<vmem>>, vector<1x2x32xf32>,
    return
  }
  func.func @transform_0(%arg0: i32) -> (i32, i32, i32) {
    %c0_i32 = arith.constant 0 : i32
    %c0_i32_0 = arith.constant 0 : i32
    %c0_i32_1 = arith.constant 0 : i32
    return %arg0, %c0_i32, %c0_i32_0 : i32, i32, i32
  }
  func.func @transform_1(%arg0: i32) -> (i32, i32, i32) {
    %c0_i32 = arith.constant 0 : i32
    %c0_i32_0 = arith.constant 0 : i32
    %c0_i32_1 = arith.constant 0 : i32
    return %arg0, %c0_i32, %c0_i32_0 : i32, i32, i32
  }
  func.func @transform_2(%arg0: i32) -> (i32, i32, i32) {
    %c0_i32 = arith.constant 0 : i32
    %c0_i32_0 = arith.constant 0 : i32
    %c0_i32_1 = arith.constant 0 : i32
    return %arg0, %c0_i32, %c0_i32_0 : i32, i32, i32
  }
  func.func @transform_3(%arg0: i32) -> (i32, i32, i32, i32) {
    %c0_i32 = arith.constant 0 : i32
    %c0_i32_0 = arith.constant 0 : i32
    %c0_i32_1 = arith.constant 0 : i32
    %c0_i32_2 = arith.constant 0 : i32
    return %arg0, %c0_i32, %c0_i32_0, %c0_i32_1 : i32, i32, i32, i32
  }
  func.func @transform_4(%arg0: i32) -> (i32, i32, i32, i32) {
    %c0_i32 = arith.constant 0 : i32
    %c0_i32_0 = arith.constant 0 : i32
    %c0_i32_1 = arith.constant 0 : i32
    %c0_i32_2 = arith.constant 0 : i32
    return %arg0, %c0_i32, %c0_i32_0, %c0_i32_1 : i32, i32, i32, i32
  }
  func.func @transform_5(%arg0: i32) -> (i32, i32, i32, i32) {
    %c0_i32 = arith.constant 0 : i32
    %c0_i32_0 = arith.constant 0 : i32
    %c0_i32_1 = arith.constant 0 : i32
    %c0_i32_2 = arith.constant 0 : i32
    return %arg0, %c0_i32, %c0_i32_0, %c0_i32_1 : i32, i32, i32, i32
  }
  func.func @transform_6(%arg0: i32) -> (i32, i32, i32, i32) {
    %c0_i32 = arith.constant 0 : i32
    %c0_i32_0 = arith.constant 0 : i32
    %c0_i32_1 = arith.constant 0 : i32
    %c0_i32_2 = arith.constant 0 : i32
    return %arg0, %c0_i32, %c0_i32_0, %c0_i32_1 : i32, i32, i32, i32
  }
  func.func @transform_7(%arg0: i32) -> (i32, i32, i32) {
    %c0_i32 = arith.constant 0 : i32
    %c0_i32_0 = arith.constant 0 : i32
    %c0_i32_1 = arith.constant 0 : i32
    return %arg0, %c0_i32, %c0_i32_0 : i32, i32, i32
  }
  func.func @transform_8(%arg0: i32) -> (i32, i32, i32) {
    %c0_i32 = arith.constant 0 : i32
    %c0_i32_0 = arith.constant 0 : i32
    %c0_i32_1 = arith.constant 0 : i32
    return %arg0, %c0_i32, %c0_i32_0 : i32, i32, i32
  }
  func.func @transform_9(%arg0: i32) -> (i32, i32, i32) {
    %c0_i32 = arith.constant 0 : i32
    %c0_i32_0 = arith.constant 0 : i32
    %c0_i32_1 = arith.constant 0 : i32
    return %arg0, %c0_i32, %c0_i32_0 : i32, i32, i32
  }
}

</mosaic_0001>

<llo_original>
// kernel: tpu_custom_call.1
$region0: #{tpu_custom_call.1}
  #allocation0 [shape = 'u32[]', space=smem, size = 0x4, offset = 0x4, fixed_abs, tag = 'smem constant byte address 0x4 - core index']
  #allocation1 [shape = 'u32[72,128]{1,0:T(1,128)}', space=vmem, size = 0x9000, scoped, tag = 'internal scratch']
  %s0 = inlined_call_operand.vmem [shape: f32[1,2,64], index: 0, kind: input, shape index: {}]
  %s1 = inlined_call_operand.vmem [shape: bf16[1,64,128], index: 1, kind: input, shape index: {}]
  %s2 = inlined_call_operand.vmem [shape: f32[1,1,128], index: 2, kind: input, shape index: {}]
  %s3 = inlined_call_operand.hbm [shape: bf16[1,2,128,128], index: 3, kind: input, shape index: {}]
  %s4 = inlined_call_operand.vmem [shape: f32[1,2,1,128], index: 4, kind: input, shape index: {}]
  %s5 = inlined_call_operand.hbm [shape: bf16[1,2,128,128], index: 5, kind: input, shape index: {}]
  %s6 = inlined_call_operand.vmem [shape: f32[1,2,1,128], index: 6, kind: input, shape index: {}]
  %s7 = inlined_call_operand.vmem [shape: bf16[1,128,32], index: 7, kind: input, shape index: {}]
  %s8 = inlined_call_operand.vmem [shape: f32[1,1,32], index: 8, kind: input, shape index: {}]
  %s9 = inlined_call_operand.hbm [shape: f32[1,2,32], index: 9, kind: output, shape index: {}]
  %s10 = sld [smem:[#allocation0]]
  $region54: #{tpu_custom_call.1} parent=0
    _
  %s12 = ssub.s32 1, %s10
  %s13 = scalar_select 0, %s12, %s10
  $region1: #{tpu_custom_call.1} parent=0
    #allocation2 [shape = 'u8[65536]{0}', space=vmem, size = 0x10000, scoped, tag = 'input window, operand 3, single buffered']
    #allocation3 [shape = 's32[1]{0}', space=sflag, size = 0x4, scoped, tag = 'scoped memory for tpu_custom_call.1']
    #allocation4 [shape = 's32[1]{0}', space=sflag, size = 0x4, scoped, tag = 'scoped memory for tpu_custom_call.1']
    #allocation5 [shape = 'u8[65536]{0}', space=vmem, size = 0x10000, scoped, tag = 'input window, operand 5, single buffered']
    #allocation6 [shape = 's32[1]{0}', space=sflag, size = 0x4, scoped, tag = 'scoped memory for tpu_custom_call.1']
    #allocation7 [shape = 'u8[1024]{0}', space=vmem, size = 0x400, scoped, tag = 'output window, operand 0, single buffered']
    %14 = vsyncpa [#allocation3], 0
    %15 = vsyncpa [#allocation6], 0
    %16 = vsyncpa [#allocation4], 0
    // Predicated region
    $region2: #{tpu_custom_call.1} parent=1 // pred_check
      _
    $region3: #{tpu_custom_call.1} parent=1 // pred_check_branch
      %18 = sbr.rel (0) target = $region5
    $region4: #{tpu_custom_call.1} parent=1 // pred_region
      _
    $region5: #{tpu_custom_call.1} parent=1 // pred_fallthru
      _
    // Predicated region
    $region6: #{tpu_custom_call.1} parent=1 // pred_check
      _
    $region7: #{tpu_custom_call.1} parent=1 // pred_check_branch
      %20 = sbr.rel (0) target = $region9
    $region8: #{tpu_custom_call.1} parent=1 // pred_region
      _
    $region9: #{tpu_custom_call.1} parent=1 // pred_fallthru
      _
    // Predicated region
    $region10: #{tpu_custom_call.1} parent=1 // pred_check
      _
    $region11: #{tpu_custom_call.1} parent=1 // pred_check_branch
      %22 = sbr.rel (0) target = $region13
    $region12: #{tpu_custom_call.1} parent=1 // pred_region
      _
    $region13: #{tpu_custom_call.1} parent=1 // pred_fallthru
      _
    // Predicated region
    $region14: #{tpu_custom_call.1} parent=1 // pred_check
      _
    $region15: #{tpu_custom_call.1} parent=1 // pred_check_branch
      %24 = sbr.rel (0) target = $region17
    $region16: #{tpu_custom_call.1} parent=1 // pred_region
      %26 = vsyncadd [#allocation3], 0
      %s27 = sshll.u32 %s3, 4
      %s28 = int_to_ptr.hbm [resolvable:$true] %s27
      %s29 = sshll.u32 [#allocation2], 4
      %s30 = int_to_ptr.vmem [resolvable:$true] %s29
      %35 = dma.hbm_to_vmem [thread:$0]  %s28, 2048, %s30, [#allocation3], 64, 64, 4
    $region17: #{tpu_custom_call.1} parent=1 // pred_fallthru
      _
    // Predicated region
    $region18: #{tpu_custom_call.1} parent=1 // pred_check
      _
    $region19: #{tpu_custom_call.1} parent=1 // pred_check_branch
      %37 = sbr.rel (0) target = $region21
    $region20: #{tpu_custom_call.1} parent=1 // pred_region
      _
    $region21: #{tpu_custom_call.1} parent=1 // pred_fallthru
      _
    // Predicated region
    $region22: #{tpu_custom_call.1} parent=1 // pred_check
      _
    $region23: #{tpu_custom_call.1} parent=1 // pred_check_branch
      %39 = sbr.rel (0) target = $region25
    $region24: #{tpu_custom_call.1} parent=1 // pred_region
      %41 = vsyncadd [#allocation6], 0
      %s42 = sshll.u32 %s5, 4
      %s43 = int_to_ptr.hbm [resolvable:$true] %s42
      %s44 = sshll.u32 [#allocation5], 4
      %s45 = int_to_ptr.vmem [resolvable:$true] %s44
      %50 = dma.hbm_to_vmem [thread:$0]  %s43, 2048, %s45, [#allocation6], 64, 64, 4
    $region25: #{tpu_custom_call.1} parent=1 // pred_fallthru
      _
    // Predicated region
    $region26: #{tpu_custom_call.1} parent=1 // pred_check
      _
    $region27: #{tpu_custom_call.1} parent=1 // pred_check_branch
      %52 = sbr.rel (0) target = $region29
    $region28: #{tpu_custom_call.1} parent=1 // pred_region
      _
    $region29: #{tpu_custom_call.1} parent=1 // pred_fallthru
      _
    // Predicated region
    $region30: #{tpu_custom_call.1} parent=1 // pred_check
      _
    $region31: #{tpu_custom_call.1} parent=1 // pred_check_branch
      %54 = sbr.rel (0) target = $region33
    $region32: #{tpu_custom_call.1} parent=1 // pred_region
      _
    $region33: #{tpu_custom_call.1} parent=1 // pred_fallthru
      _
    // Predicated region
    $region34: #{tpu_custom_call.1} parent=1 // pred_check
      _
    $region35: #{tpu_custom_call.1} parent=1 // pred_check_branch
      %56 = sbr.rel (0) target = $region37
    $region36: #{tpu_custom_call.1} parent=1 // pred_region
      _
    $region37: #{tpu_custom_call.1} parent=1 // pred_fallthru
      _
    // Predicated region
    $region38: #{tpu_custom_call.1} parent=1 // pred_check
      _
    $region39: #{tpu_custom_call.1} parent=1 // pred_check_branch
      %58 = sbr.rel (0) target = $region41
    $region40: #{tpu_custom_call.1} parent=1 // pred_region
      %60 = dma.done [#allocation3], 2048
    $region41: #{tpu_custom_call.1} parent=1 // pred_fallthru
      _
    // Predicated region
    $region42: #{tpu_custom_call.1} parent=1 // pred_check
      _
    $region43: #{tpu_custom_call.1} parent=1 // pred_check_branch
      %62 = sbr.rel (0) target = $region45
    $region44: #{tpu_custom_call.1} parent=1 // pred_region
      %64 = dma.done [#allocation6], 2048
    $region45: #{tpu_custom_call.1} parent=1 // pred_fallthru
      _
    %v66 = vld [vmem:[%s0] sm:$0x3]
    %v67 = vpack.c.bf16 %v66, %v66
    %v68 = vld [vmem:[%s1] sm:$0xf]
    %v69 = vld [vmem:[%s1 + $0x4] sm:$0xf]
    %v70 = vld [vmem:[%s1 + $0x8] sm:$0xf]
    %v71 = vld [vmem:[%s1 + $0xc] sm:$0xf]
    %v72 = vld [vmem:[%s1 + $0x10] sm:$0xf]
    %v73 = vld [vmem:[%s1 + $0x14] sm:$0xf]
    %v74 = vld [vmem:[%s1 + $0x18] sm:$0xf]
    %v75 = vld [vmem:[%s1 + $0x1c] sm:$0xf]
    %v76 = vld [vmem:[%s2] sm:$0x1]
    %v78 = vperm.slane %v76, 0
    %v88 = vunpack.c.l.b16 %v68
    %v89 = vunpack.c.l.b16 %v69
    %v90 = vunpack.c.l.b16 %v70
    %v91 = vunpack.c.l.b16 %v71
    %v92 = vunpack.c.l.b16 %v72
    %v93 = vunpack.c.l.b16 %v73
    %v94 = vunpack.c.l.b16 %v74
    %v95 = vunpack.c.l.b16 %v75
    %v96 = vpack.c.b16 %v89, %v88
    %v97 = vpack.c.b16 %v91, %v90
    %v98 = vpack.c.b16 %v93, %v92
    %v99 = vpack.c.b16 %v95, %v94
    %vm104 = vcmask 523264
    %v106 = vsel %vm104, %v67, 0
    %108 = vmatpush.bf16.msra.mxu0 0
    %109 = vmatpush.bf16.msra.mxu0 0
    %110 = vmatpush.bf16.msra.mxu0 0
    %111 = vmatpush.bf16.msra.mxu0 0
    %112 = vmatpush.bf16.msra.mxu0 %v99
    %113 = vmatpush.bf16.msra.mxu0 %v98
    %114 = vmatpush.bf16.msra.mxu0 %v97
    %115 = vmatpush.bf16.msra.mxu0 %v96
    %116 = vmatmul.bf16.gmra.mxu0 %v106
    %v117 = vpop.f32.mrf.mxu0
    %v118 = vadd.f32 %v78, %v117
    %v119 = vpop.f32.mrf.mxu0
    %120 = vdwg.mxu0
    %v121 = vmax.f32 %v118, 0.0
    %v122 = vpack.c.bf16 %v121, %v121
    %v123 = vld [vmem:[#allocation2] sm:$0xf]
    %v124 = vld [vmem:[#allocation2 + $0x4] sm:$0xf]
    %v125 = vld [vmem:[#allocation2 + $0x8] sm:$0xf]
    %v126 = vld [vmem:[#allocation2 + $0xc] sm:$0xf]
    %v127 = vld [vmem:[#allocation2 + $0x10] sm:$0xf]
    %v128 = vld [vmem:[#allocation2 + $0x14] sm:$0xf]
    %v129 = vld [vmem:[#allocation2 + $0x18] sm:$0xf]
    %v130 = vld [vmem:[#allocation2 + $0x1c] sm:$0xf]
    %v131 = vld [vmem:[#allocation2 + $0x20] sm:$0xf]
    %v132 = vld [vmem:[#allocation2 + $0x24] sm:$0xf]
    %v133 = vld [vmem:[#allocation2 + $0x28] sm:$0xf]
    %v134 = vld [vmem:[#allocation2 + $0x2c] sm:$0xf]
    %v135 = vld [vmem:[#allocation2 + $0x30] sm:$0xf]
    %v136 = vld [vmem:[#allocation2 + $0x34] sm:$0xf]
    %v137 = vld [vmem:[#allocation2 + $0x38] sm:$0xf]
    %v138 = vld [vmem:[#allocation2 + $0x3c] sm:$0xf]
    %v139 = vld [vmem:[%s4] sm:$0x1]
    %v141 = vperm.slane %v139, 0
    %v159 = vunpack.c.l.b16 %v123
    %v160 = vunpack.c.l.b16 %v124
    %v161 = vunpack.c.l.b16 %v125
    %v162 = vunpack.c.l.b16 %v126
    %v163 = vunpack.c.l.b16 %v127
    %v164 = vunpack.c.l.b16 %v128
    %v165 = vunpack.c.l.b16 %v129
    %v166 = vunpack.c.l.b16 %v130
    %v167 = vunpack.c.l.b16 %v131
    %v168 = vunpack.c.l.b16 %v132
    %v169 = vunpack.c.l.b16 %v133
    %v170 = vunpack.c.l.b16 %v134
    %v171 = vunpack.c.l.b16 %v135
    %v172 = vunpack.c.l.b16 %v136
    %v173 = vunpack.c.l.b16 %v137
    %v174 = vunpack.c.l.b16 %v138
    %v175 = vpack.c.b16 %v160, %v159
    %v176 = vpack.c.b16 %v162, %v161
    %v177 = vpack.c.b16 %v164, %v163
    %v178 = vpack.c.b16 %v166, %v165
    %v179 = vpack.c.b16 %v168, %v167
    %v180 = vpack.c.b16 %v170, %v169
    %v181 = vpack.c.b16 %v172, %v171
    %v182 = vpack.c.b16 %v174, %v173
    %191 = vmatpush.bf16.msra.mxu0 %v182
    %192 = vmatpush.bf16.msra.mxu0 %v181
    %193 = vmatpush.bf16.msra.mxu0 %v180
    %194 = vmatpush.bf16.msra.mxu0 %v179
    %195 = vmatpush.bf16.msra.mxu0 %v178
    %196 = vmatpush.bf16.msra.mxu0 %v177
    %197 = vmatpush.bf16.msra.mxu0 %v176
    %198 = vmatpush.bf16.msra.mxu0 %v175
    %199 = vmatmul.bf16.gmra.mxu0 %v122
    %v200 = vpop.f32.mrf.mxu0
    %v201 = vadd.f32 %v141, %v200
    %v202 = vpop.f32.mrf.mxu0
    %203 = vdwg.mxu0
    %v204 = vmax.f32 %v201, 0.0
    %v205 = vpack.c.bf16 %v204, %v204
    %v206 = vld [vmem:[#allocation5] sm:$0xf]
    %v207 = vld [vmem:[#allocation5 + $0x4] sm:$0xf]
    %v208 = vld [vmem:[#allocation5 + $0x8] sm:$0xf]
    %v209 = vld [vmem:[#allocation5 + $0xc] sm:$0xf]
    %v210 = vld [vmem:[#allocation5 + $0x10] sm:$0xf]
    %v211 = vld [vmem:[#allocation5 + $0x14] sm:$0xf]
    %v212 = vld [vmem:[#allocation5 + $0x18] sm:$0xf]
    %v213 = vld [vmem:[#allocation5 + $0x1c] sm:$0xf]
    %v214 = vld [vmem:[#allocation5 + $0x20] sm:$0xf]
    %v215 = vld [vmem:[#allocation5 + $0x24] sm:$0xf]
    %v216 = vld [vmem:[#allocation5 + $0x28] sm:$0xf]
    %v217 = vld [vmem:[#allocation5 + $0x2c] sm:$0xf]
    %v218 = vld [vmem:[#allocation5 + $0x30] sm:$0xf]
    %v219 = vld [vmem:[#allocation5 + $0x34] sm:$0xf]
    %v220 = vld [vmem:[#allocation5 + $0x38] sm:$0xf]
    %v221 = vld [vmem:[#allocation5 + $0x3c] sm:$0xf]
    %v222 = vld [vmem:[%s6] sm:$0x1]
    %v224 = vperm.slane %v222, 0
    %v242 = vunpack.c.l.b16 %v206
    %v243 = vunpack.c.l.b16 %v207
    %v244 = vunpack.c.l.b16 %v208
    %v245 = vunpack.c.l.b16 %v209
    %v246 = vunpack.c.l.b16 %v210
    %v247 = vunpack.c.l.b16 %v211
    %v248 = vunpack.c.l.b16 %v212
    %v249 = vunpack.c.l.b16 %v213
    %v250 = vunpack.c.l.b16 %v214
    %v251 = vunpack.c.l.b16 %v215
    %v252 = vunpack.c.l.b16 %v216
    %v253 = vunpack.c.l.b16 %v217
    %v254 = vunpack.c.l.b16 %v218
    %v255 = vunpack.c.l.b16 %v219
    %v256 = vunpack.c.l.b16 %v220
    %v257 = vunpack.c.l.b16 %v221
    %v258 = vpack.c.b16 %v243, %v242
    %v259 = vpack.c.b16 %v245, %v244
    %v260 = vpack.c.b16 %v247, %v246
    %v261 = vpack.c.b16 %v249, %v248
    %v262 = vpack.c.b16 %v251, %v250
    %v263 = vpack.c.b16 %v253, %v252
    %v264 = vpack.c.b16 %v255, %v254
    %v265 = vpack.c.b16 %v257, %v256
    %274 = vmatpush.bf16.msra.mxu0 %v265
    %275 = vmatpush.bf16.msra.mxu0 %v264
    %276 = vmatpush.bf16.msra.mxu0 %v263
    %277 = vmatpush.bf16.msra.mxu0 %v262
    %278 = vmatpush.bf16.msra.mxu0 %v261
    %279 = vmatpush.bf16.msra.mxu0 %v260
    %280 = vmatpush.bf16.msra.mxu0 %v259
    %281 = vmatpush.bf16.msra.mxu0 %v258
    %282 = vmatmul.bf16.gmra.mxu0 %v205
    %v283 = vpop.f32.mrf.mxu0
    %v284 = vadd.f32 %v224, %v283
    %v285 = vpop.f32.mrf.mxu0
    %286 = vdwg.mxu0
    %v287 = vadd.f32 %v118, %v284
    %v288 = vmax.f32 %v287, 0.0
    %v289 = vpack.c.bf16 %v288, %v288
    %s290 = scalar_lea.vmem [#allocation2], 64
    %v291 = vld [vmem:[%s290] sm:$0xf]
    %v292 = vld [vmem:[%s290 + $0x4] sm:$0xf]
    %v293 = vld [vmem:[%s290 + $0x8] sm:$0xf]
    %v294 = vld [vmem:[%s290 + $0xc] sm:$0xf]
    %v295 = vld [vmem:[%s290 + $0x10] sm:$0xf]
    %v296 = vld [vmem:[%s290 + $0x14] sm:$0xf]
    %v297 = vld [vmem:[%s290 + $0x18] sm:$0xf]
    %v298 = vld [vmem:[%s290 + $0x1c] sm:$0xf]
    %v299 = vld [vmem:[%s290 + $0x20] sm:$0xf]
    %v300 = vld [vmem:[%s290 + $0x24] sm:$0xf]
    %v301 = vld [vmem:[%s290 + $0x28] sm:$0xf]
    %v302 = vld [vmem:[%s290 + $0x2c] sm:$0xf]
    %v303 = vld [vmem:[%s290 + $0x30] sm:$0xf]
    %v304 = vld [vmem:[%s290 + $0x34] sm:$0xf]
    %v305 = vld [vmem:[%s290 + $0x38] sm:$0xf]
    %v306 = vld [vmem:[%s290 + $0x3c] sm:$0xf]
    %s307 = scalar_lea.vmem %s4, 1
    %v308 = vld [vmem:[%s307] sm:$0x1]
    %v310 = vperm.slane %v308, 0
    %v328 = vunpack.c.l.b16 %v291
    %v329 = vunpack.c.l.b16 %v292
    %v330 = vunpack.c.l.b16 %v293
    %v331 = vunpack.c.l.b16 %v294
    %v332 = vunpack.c.l.b16 %v295
    %v333 = vunpack.c.l.b16 %v296
    %v334 = vunpack.c.l.b16 %v297
    %v335 = vunpack.c.l.b16 %v298
    %v336 = vunpack.c.l.b16 %v299
    %v337 = vunpack.c.l.b16 %v300
    %v338 = vunpack.c.l.b16 %v301
    %v339 = vunpack.c.l.b16 %v302
    %v340 = vunpack.c.l.b16 %v303
    %v341 = vunpack.c.l.b16 %v304
    %v342 = vunpack.c.l.b16 %v305
    %v343 = vunpack.c.l.b16 %v306
    %v344 = vpack.c.b16 %v329, %v328
    %v345 = vpack.c.b16 %v331, %v330
    %v346 = vpack.c.b16 %v333, %v332
    %v347 = vpack.c.b16 %v335, %v334
    %v348 = vpack.c.b16 %v337, %v336
    %v349 = vpack.c.b16 %v339, %v338
    %v350 = vpack.c.b16 %v341, %v340
    %v351 = vpack.c.b16 %v343, %v342
    %360 = vmatpush.bf16.msra.mxu0 %v351
    %361 = vmatpush.bf16.msra.mxu0 %v350
    %362 = vmatpush.bf16.msra.mxu0 %v349
    %363 = vmatpush.bf16.msra.mxu0 %v348
    %364 = vmatpush.bf16.msra.mxu0 %v347
    %365 = vmatpush.bf16.msra.mxu0 %v346
    %366 = vmatpush.bf16.msra.mxu0 %v345
    %367 = vmatpush.bf16.msra.mxu0 %v344
    %368 = vmatmul.bf16.gmra.mxu0 %v289
    %v369 = vpop.f32.mrf.mxu0
    %v370 = vadd.f32 %v310, %v369
    %v371 = vpop.f32.mrf.mxu0
    %372 = vdwg.mxu0
    %v373 = vmax.f32 %v370, 0.0
    %v374 = vpack.c.bf16 %v373, %v373
    %s375 = scalar_lea.vmem [#allocation5], 64
    %v376 = vld [vmem:[%s375] sm:$0xf]
    %v377 = vld [vmem:[%s375 + $0x4] sm:$0xf]
    %v378 = vld [vmem:[%s375 + $0x8] sm:$0xf]
    %v379 = vld [vmem:[%s375 + $0xc] sm:$0xf]
    %v380 = vld [vmem:[%s375 + $0x10] sm:$0xf]
    %v381 = vld [vmem:[%s375 + $0x14] sm:$0xf]
    %v382 = vld [vmem:[%s375 + $0x18] sm:$0xf]
    %v383 = vld [vmem:[%s375 + $0x1c] sm:$0xf]
    %v384 = vld [vmem:[%s375 + $0x20] sm:$0xf]
    %v385 = vld [vmem:[%s375 + $0x24] sm:$0xf]
    %v386 = vld [vmem:[%s375 + $0x28] sm:$0xf]
    %v387 = vld [vmem:[%s375 + $0x2c] sm:$0xf]
    %v388 = vld [vmem:[%s375 + $0x30] sm:$0xf]
    %v389 = vld [vmem:[%s375 + $0x34] sm:$0xf]
    %v390 = vld [vmem:[%s375 + $0x38] sm:$0xf]
    %v391 = vld [vmem:[%s375 + $0x3c] sm:$0xf]
    %s392 = scalar_lea.vmem %s6, 1
    %v393 = vld [vmem:[%s392] sm:$0x1]
    %v395 = vperm.slane %v393, 0
    %v413 = vunpack.c.l.b16 %v376
    %v414 = vunpack.c.l.b16 %v377
    %v415 = vunpack.c.l.b16 %v378
    %v416 = vunpack.c.l.b16 %v379
    %v417 = vunpack.c.l.b16 %v380
    %v418 = vunpack.c.l.b16 %v381
    %v419 = vunpack.c.l.b16 %v382
    %v420 = vunpack.c.l.b16 %v383
    %v421 = vunpack.c.l.b16 %v384
    %v422 = vunpack.c.l.b16 %v385
    %v423 = vunpack.c.l.b16 %v386
    %v424 = vunpack.c.l.b16 %v387
    %v425 = vunpack.c.l.b16 %v388
    %v426 = vunpack.c.l.b16 %v389
    %v427 = vunpack.c.l.b16 %v390
    %v428 = vunpack.c.l.b16 %v391
    %v429 = vpack.c.b16 %v414, %v413
    %v430 = vpack.c.b16 %v416, %v415
    %v431 = vpack.c.b16 %v418, %v417
    %v432 = vpack.c.b16 %v420, %v419
    %v433 = vpack.c.b16 %v422, %v421
    %v434 = vpack.c.b16 %v424, %v423
    %v435 = vpack.c.b16 %v426, %v425
    %v436 = vpack.c.b16 %v428, %v427
    %445 = vmatpush.bf16.msra.mxu0 %v436
    %446 = vmatpush.bf16.msra.mxu0 %v435
    %447 = vmatpush.bf16.msra.mxu0 %v434
    %448 = vmatpush.bf16.msra.mxu0 %v433
    %449 = vmatpush.bf16.msra.mxu0 %v432
    %450 = vmatpush.bf16.msra.mxu0 %v431
    %451 = vmatpush.bf16.msra.mxu0 %v430
    %452 = vmatpush.bf16.msra.mxu0 %v429
    %453 = vmatmul.bf16.gmra.mxu0 %v374
    %v454 = vpop.f32.mrf.mxu0
    %v455 = vadd.f32 %v395, %v454
    %v456 = vpop.f32.mrf.mxu0
    %457 = vdwg.mxu0
    %v458 = vadd.f32 %v287, %v455
    %v459 = vpack.c.bf16 %v458, %v458
    %v460 = vld [vmem:[%s7] sm:$0xf]
    %v461 = vld [vmem:[%s7 + $0x4] sm:$0xf]
    %v462 = vld [vmem:[%s7 + $0x8] sm:$0xf]
    %v463 = vld [vmem:[%s7 + $0xc] sm:$0xf]
    %v464 = vld [vmem:[%s7 + $0x10] sm:$0xf]
    %v465 = vld [vmem:[%s7 + $0x14] sm:$0xf]
    %v466 = vld [vmem:[%s7 + $0x18] sm:$0xf]
    %v467 = vld [vmem:[%s7 + $0x1c] sm:$0xf]
    %v468 = vld [vmem:[%s7 + $0x20] sm:$0xf]
    %v469 = vld [vmem:[%s7 + $0x24] sm:$0xf]
    %v470 = vld [vmem:[%s7 + $0x28] sm:$0xf]
    %v471 = vld [vmem:[%s7 + $0x2c] sm:$0xf]
    %v472 = vld [vmem:[%s7 + $0x30] sm:$0xf]
    %v473 = vld [vmem:[%s7 + $0x34] sm:$0xf]
    %v474 = vld [vmem:[%s7 + $0x38] sm:$0xf]
    %v475 = vld [vmem:[%s7 + $0x3c] sm:$0xf]
    %v476 = vld [vmem:[%s8] sm:$0x1]
    %v478 = vperm.slane %v476, 0
    %v496 = vunpack.c.l.b16 %v460
    %v497 = vunpack.c.l.b16 %v461
    %v498 = vunpack.c.l.b16 %v462
    %v499 = vunpack.c.l.b16 %v463
    %v500 = vunpack.c.l.b16 %v464
    %v501 = vunpack.c.l.b16 %v465
    %v502 = vunpack.c.l.b16 %v466
    %v503 = vunpack.c.l.b16 %v467
    %v504 = vunpack.c.l.b16 %v468
    %v505 = vunpack.c.l.b16 %v469
    %v506 = vunpack.c.l.b16 %v470
    %v507 = vunpack.c.l.b16 %v471
    %v508 = vunpack.c.l.b16 %v472
    %v509 = vunpack.c.l.b16 %v473
    %v510 = vunpack.c.l.b16 %v474
    %v511 = vunpack.c.l.b16 %v475
    %v512 = vpack.c.b16 %v497, %v496
    %v513 = vpack.c.b16 %v499, %v498
    %v514 = vpack.c.b16 %v501, %v500
    %v515 = vpack.c.b16 %v503, %v502
    %v516 = vpack.c.b16 %v505, %v504
    %v517 = vpack.c.b16 %v507, %v506
    %v518 = vpack.c.b16 %v509, %v508
    %v519 = vpack.c.b16 %v511, %v510
    %528 = vmatpush.bf16.msra.mxu0 %v519
    %529 = vmatpush.bf16.msra.mxu0 %v518
    %530 = vmatpush.bf16.msra.mxu0 %v517
    %531 = vmatpush.bf16.msra.mxu0 %v516
    %532 = vmatpush.bf16.msra.mxu0 %v515
    %533 = vmatpush.bf16.msra.mxu0 %v514
    %534 = vmatpush.bf16.msra.mxu0 %v513
    %535 = vmatpush.bf16.msra.mxu0 %v512
    %536 = vmatmul.bf16.gmra.mxu0 %v459
    %v537 = vpop.f32.mrf.mxu0
    %v538 = vadd.f32 %v478, %v537
    %v539 = vpop.f32.mrf.mxu0
    %540 = vdwg.mxu0
    %vm541 = vcmask 254976
    %542 = vst.msk [vmem:[#allocation7] sm:$0x3] %vm541, %v538
    // Predicated region
    $region46: #{tpu_custom_call.1} parent=1 // pred_check
      _
    $region47: #{tpu_custom_call.1} parent=1 // pred_check_branch
      %544 = sbr.rel (0) target = $region49
    $region48: #{tpu_custom_call.1} parent=1 // pred_region
      %546 = vsyncadd [#allocation4], 0
      %s548 = sshll.u32 [#allocation7], 4
      %s549 = int_to_ptr.vmem [resolvable:$true] %s548
      %s550 = sshll.u32 %s9, 4
      %s551 = int_to_ptr.hbm [resolvable:$true] %s550
      %553 = dma.vmem_to_hbm [thread:$0]  %s549, 32, %s551, [#allocation4]
    $region49: #{tpu_custom_call.1} parent=1 // pred_fallthru
      _
    // Predicated region
    $region50: #{tpu_custom_call.1} parent=1 // pred_check
      _
    $region51: #{tpu_custom_call.1} parent=1 // pred_check_branch
      %555 = sbr.rel (0) target = $region53
    $region52: #{tpu_custom_call.1} parent=1 // pred_region
      %557 = dma.done [#allocation4], 32
    $region53: #{tpu_custom_call.1} parent=1 // pred_fallthru
      _
    %558 = vsyncpa [#allocation3], 1
    %559 = vsyncpa [#allocation6], 1
    %560 = vsyncpa [#allocation4], 1

</llo_original>
